<compile_context>
chip_gen: v7x
topology: tpu7x:2x2x1
jax: 0.10.0
libtpu: 0.0.40
codegen_flags: <defaults>
</compile_context>

<pallas_src>
import functools
import math

import jax
import jax.numpy as jnp
from jax.experimental import pallas as pl
from jax.experimental.pallas import tpu as pltpu

_LANES = 128            # boxes along the lane axis
_ROWS_MAX = 1024        # sublane rows per grid step (1024*128 = 131072 boxes)
_PALLAS_MIN_BOXES = 16384  # below this, a fused XLA path beats pack + launch


def _round_up(x, m):
    return (x + m - 1) // m * m


def _iou_loss_kernel(en_ref, p_ref, t_ref, loss_ref, *, loss_type):
    """Elementwise IoU-family loss on dense (R, 128) tiles of boxes.

    p_ref / t_ref blocks are (4, R, 128): rows 0..3 = [cx, cy, w, h].
    """
    eps = jnp.float32(1e-7)
    f32 = jnp.float32

    px, py = p_ref[0].astype(f32), p_ref[1].astype(f32)
    pw, ph = p_ref[2].astype(f32), p_ref[3].astype(f32)
    tx, ty = t_ref[0].astype(f32), t_ref[1].astype(f32)
    tw, th = t_ref[2].astype(f32), t_ref[3].astype(f32)

    # Corner coordinates computed once, reused for intersection + enclosing box.
    p_x0, p_x1 = px - pw * 0.5, px + pw * 0.5
    p_y0, p_y1 = py - ph * 0.5, py + ph * 0.5
    t_x0, t_x1 = tx - tw * 0.5, tx + tw * 0.5
    t_y0, t_y1 = ty - th * 0.5, ty + th * 0.5

    tl_x = jnp.maximum(p_x0, t_x0)
    tl_y = jnp.maximum(p_y0, t_y0)
    br_x = jnp.minimum(p_x1, t_x1)
    br_y = jnp.minimum(p_y1, t_y1)

    en = en_ref[0].astype(f32)  # global scalar flag via scalar prefetch
    area_ovr = (br_x - tl_x) * (br_y - tl_y) * en
    area_uni = pw * ph + tw * th - area_ovr
    iou = area_ovr / jnp.maximum(area_uni, eps)

    if loss_type == "iou":
        loss = 1.0 - iou * iou
    elif loss_type == "giou":
        c_w = jnp.maximum(p_x1, t_x1) - jnp.minimum(p_x0, t_x0)
        c_h = jnp.maximum(p_y1, t_y1) - jnp.minimum(p_y0, t_y0)
        c_area = c_w * c_h
        giou = iou - (c_area - area_uni) / jnp.maximum(c_area, eps)
        loss = 1.0 - jnp.clip(giou, -1.0, 1.0)
    elif loss_type in ("ciou", "diou"):
        c_w = jnp.maximum(p_x1, t_x1) - jnp.minimum(p_x0, t_x0)
        c_h = jnp.maximum(p_y1, t_y1) - jnp.minimum(p_y0, t_y0)
        c_diag = jnp.maximum(c_w * c_w + c_h * c_h, eps)
        rho2 = (tx - px) ** 2 + (ty - py) ** 2
        if loss_type == "ciou":
            pw_c, ph_c = jnp.maximum(pw, eps), jnp.maximum(ph, eps)
            gw_c, gh_c = jnp.maximum(tw, eps), jnp.maximum(th, eps)
            v = (4.0 / (math.pi ** 2)) * (
                jnp.arctan(gw_c / gh_c) - jnp.arctan(pw_c / ph_c)) ** 2
            # torch computes alpha under no_grad; forward value is identical.
            alpha = v / jnp.maximum(1.0 - iou + v, eps)
            loss = 1.0 - iou + (rho2 / c_diag + v * alpha)
        else:
            loss = 1.0 - iou + rho2 / c_diag
    else:
        raise ValueError(f"unknown loss_type {loss_type}")

    loss_ref[...] = loss


def _pack_channel_major(x, n_pad, nrows_pad, dtype):
    """(n, 4) box tensor -> channel-major (4, nrows_pad, 128) slab."""
    x = x.astype(dtype)
    x = jnp.pad(x, ((0, n_pad - x.shape[0]), (0, 0)))
    return jnp.transpose(x.reshape(nrows_pad, _LANES, 4), (2, 0, 1))


def _iou_loss_jax(pred, target, loss_type):
    """Fused pure-JAX per-box loss on the native (n, 4) layout (torch math)."""
    eps = 1e-7
    tl = jnp.maximum(pred[:, :2] - pred[:, 2:] / 2, target[:, :2] - target[:, 2:] / 2)
    br = jnp.minimum(pred[:, :2] + pred[:, 2:] / 2, target[:, :2] + target[:, 2:] / 2)
    area_p = jnp.prod(pred[:, 2:], 1)
    area_t = jnp.prod(target[:, 2:], 1)
    en = jnp.all(tl < br).astype(jnp.float32)
    area_ovr = jnp.prod(br - tl, 1) * en
    area_uni = area_p + area_t - area_ovr
    iou = area_ovr / jnp.maximum(area_uni, eps)
    if loss_type == "iou":
        loss = 1.0 - iou ** 2
    elif loss_type == "giou":
        c_tl = jnp.minimum(pred[:, :2] - pred[:, 2:] / 2, target[:, :2] - target[:, 2:] / 2)
        c_br = jnp.maximum(pred[:, :2] + pred[:, 2:] / 2, target[:, :2] + target[:, 2:] / 2)
        c_area = jnp.prod(c_br - c_tl, 1)
        giou = iou - (c_area - area_uni) / jnp.maximum(c_area, eps)
        loss = 1.0 - jnp.clip(giou, -1.0, 1.0)
    elif loss_type in ("ciou", "diou"):
        c_w = (jnp.maximum(pred[:, 0] + pred[:, 2] / 2, target[:, 0] + target[:, 2] / 2)
               - jnp.minimum(pred[:, 0] - pred[:, 2] / 2, target[:, 0] - target[:, 2] / 2))
        c_h = (jnp.maximum(pred[:, 1] + pred[:, 3] / 2, target[:, 1] + target[:, 3] / 2)
               - jnp.minimum(pred[:, 1] - pred[:, 3] / 2, target[:, 1] - target[:, 3] / 2))
        c_diag = jnp.maximum(c_w ** 2 + c_h ** 2, eps)
        rho2 = (target[:, 0] - pred[:, 0]) ** 2 + (target[:, 1] - pred[:, 1]) ** 2
        if loss_type == "ciou":
            pw = jnp.maximum(pred[:, 2], eps)
            ph = jnp.maximum(pred[:, 3], eps)
            gw = jnp.maximum(target[:, 2], eps)
            gh = jnp.maximum(target[:, 3], eps)
            v = 4.0 / math.pi ** 2 * (jnp.arctan(gw / gh) - jnp.arctan(pw / ph)) ** 2
            alpha = v / jnp.maximum(1.0 - iou + v, eps)
            loss = 1.0 - iou + (rho2 / c_diag + v * alpha)
        else:
            loss = 1.0 - iou + rho2 / c_diag
    else:
        raise ValueError(f"unknown loss_type {loss_type}")
    return loss


def iou_loss(pred, target, *, reduction="none", loss_type="iou",
             force_pallas=False):
    """Forward pass of yolox IOULoss."""
    assert pred.shape[0] == target.shape[0]
    pred = pred.reshape(-1, 4)
    target = target.reshape(-1, 4)
    n = pred.shape[0]

    if n == 0:
        loss = jnp.zeros((0,), jnp.float32)
    elif n < _PALLAS_MIN_BOXES and not force_pallas:
        # Small-N fast path: a single fused XLA elementwise on the native
        # layout beats relayout passes + pallas_call fixed cost.
        loss = _iou_loss_jax(pred.astype(jnp.float32),
                             target.astype(jnp.float32), loss_type)
    else:
        # Global `en = (tl < br).all()` (exact torch semantics), computed on
        # the UNPADDED boxes -- padded zero boxes give tl == br and would flip
        # the global all() to False.  Fed to the kernel via scalar prefetch.
        pf = pred.astype(jnp.float32)
        tf = target.astype(jnp.float32)
        tl = jnp.maximum(pf[:, :2] - pf[:, 2:] * 0.5, tf[:, :2] - tf[:, 2:] * 0.5)
        br = jnp.minimum(pf[:, :2] + pf[:, 2:] * 0.5, tf[:, :2] + tf[:, 2:] * 0.5)
        en = jnp.all(tl < br).astype(jnp.int32).reshape((1,))

        # Keep bf16 inputs as bf16 through the DMA; upcast in-kernel.
        in_dtype = jnp.promote_types(pred.dtype, target.dtype)
        pack_dtype = jnp.bfloat16 if in_dtype == jnp.dtype(jnp.bfloat16) else jnp.float32
        sub = 16 if pack_dtype == jnp.bfloat16 else 8

        nrows = pl.cdiv(n, _LANES)
        if nrows < 2 * sub:
            # Single step, but still sublane-aligned rows (no masked vld/vst).
            rows_tile = _round_up(nrows, sub)
        else:
            # >= 2 grid steps so the "parallel" axis feeds both v7x TCs.
            rows_tile = min(_round_up(pl.cdiv(nrows, 2), sub), _ROWS_MAX)
        nrows_pad = _round_up(nrows, rows_tile)
        n_pad = nrows_pad * _LANES
        grid = nrows_pad // rows_tile

        # Two independent channel-major slabs (no (n, 8) concat intermediate).
        p_slab = _pack_channel_major(pred, n_pad, nrows_pad, pack_dtype)
        t_slab = _pack_channel_major(target, n_pad, nrows_pad, pack_dtype)

        loss = pl.pallas_call(
            functools.partial(_iou_loss_kernel, loss_type=loss_type),
            out_shape=jax.ShapeDtypeStruct((nrows_pad, _LANES), jnp.float32),
            grid_spec=pltpu.PrefetchScalarGridSpec(
                num_scalar_prefetch=1,
                grid=(grid,),
                in_specs=[
                    pl.BlockSpec((4, rows_tile, _LANES),
                                 lambda j, en_s: (0, j, 0)),
                    pl.BlockSpec((4, rows_tile, _LANES),
                                 lambda j, en_s: (0, j, 0)),
                ],
                out_specs=pl.BlockSpec((rows_tile, _LANES),
                                       lambda j, en_s: (j, 0)),
            ),
            compiler_params=pltpu.CompilerParams(
                dimension_semantics=("parallel",)),
        )(en, p_slab, t_slab)

        loss = loss.reshape(n_pad)[:n]

    if reduction == "mean":
        loss = loss.mean()
    elif reduction == "sum":
        loss = loss.sum()
    return loss


def _ref_iou_loss(pred, target, reduction="none", loss_type="iou"):
    """Pure-JAX transcription of the torch forward (reference)."""
    pred = pred.reshape(-1, 4).astype(jnp.float32)
    target = target.reshape(-1, 4).astype(jnp.float32)
    loss = _iou_loss_jax(pred, target, loss_type)
    if reduction == "mean":
        loss = loss.mean()
    elif reduction == "sum":
        loss = loss.sum()
    return loss


if __name__ == "__main__":
    key = jax.random.PRNGKey(0)
    k1, k2, k3 = jax.random.split(key, 3)

    # Small shapes consistent with the module: (batch=2, anchors=8, 4) boxes.
    xy = jax.random.uniform(k1, (2, 8, 2), jnp.float32, 0.0, 8.0)
    wh = jax.random.uniform(k2, (2, 8, 2), jnp.float32, 1.0, 4.0)
    pred = jnp.concatenate([xy, wh], axis=-1)
    # target = small perturbation of pred so boxes overlap (en == 1)
    target = pred + 0.1 * jax.random.normal(k3, pred.shape, jnp.float32)

    # 1) Pallas kernel path (forced) on the small input.
    # TODO(synk): the ciou branch (arctan) is implemented in the kernel but is
    # smoke-tested only through the fused-JAX dispatch path below, since arctan
    # transcendental lowering support varies across Pallas/Mosaic versions.
    for lt in ("iou", "giou", "diou"):
        fn = jax.jit(functools.partial(iou_loss, reduction="none",
                                       loss_type=lt, force_pallas=True))
        out = jax.block_until_ready(fn(pred, target))
        ref = _ref_iou_loss(pred, target, "none", lt)
        assert out.shape == ref.shape == (16,), (lt, out.shape, ref.shape)
        assert jnp.allclose(out, ref, rtol=1e-5, atol=1e-5), (lt, out, ref)

    # 2) Default dispatch at YOLOX scale -> Pallas path with a 2-step grid.
    kb1, kb2 = jax.random.split(k3)
    n_big = 2 * 8400  # > _PALLAS_MIN_BOXES
    xyb = jax.random.uniform(kb1, (n_big, 2), jnp.float32, 0.0, 64.0)
    whb = jax.random.uniform(kb2, (n_big, 2), jnp.float32, 1.0, 16.0)
    pred_b = jnp.concatenate([xyb, whb], axis=-1)
    target_b = pred_b + 0.05 * jax.random.normal(kb1, pred_b.shape, jnp.float32)
    fn_b = jax.jit(functools.partial(iou_loss, reduction="none",
                                     loss_type="giou"))
    out_b = jax.block_until_ready(fn_b(pred_b, target_b))
    ref_b = _ref_iou_loss(pred_b, target_b, "none", "giou")
    assert out_b.shape == ref_b.shape == (n_big,)
    assert jnp.allclose(out_b, ref_b, rtol=1e-5, atol=1e-5)

    # 3) Reductions: small-N fast path and forced-Pallas path agree with ref.
    ref_sum = _ref_iou_loss(pred, target, "sum", "iou")
    out_fast = jax.block_until_ready(
        jax.jit(functools.partial(iou_loss, reduction="sum",
                                  loss_type="iou"))(pred, target))
    assert jnp.allclose(out_fast, ref_sum, rtol=1e-5, atol=1e-5)
    out_sum = jax.block_until_ready(
        jax.jit(functools.partial(iou_loss, reduction="sum", loss_type="iou",
                                  force_pallas=True))(pred, target))
    assert jnp.allclose(out_sum, ref_sum, rtol=1e-5, atol=1e-5)

    # 4) ciou exercised via the fused-JAX dispatch path (forward-only check).
    out_ciou = jax.block_until_ready(
        jax.jit(functools.partial(iou_loss, reduction="none",
                                  loss_type="ciou"))(pred, target))
    ref_ciou = _ref_iou_loss(pred, target, "none", "ciou")
    assert jnp.allclose(out_ciou, ref_ciou, rtol=1e-5, atol=1e-5)

    print("KERNEL_OK")
</pallas_src>

<mosaic_0001>
module attributes {stable_mosaic.version = 11 : i64} {
  func.func @_iou_loss_kernel(%arg0: i32, %arg1: memref<1xi32, #tpu.memory_space<smem>>, %arg2: memref<4x8x128xf32, #tpu.memory_space<vmem>>, %arg3: memref<4x8x128xf32, #tpu.memory_space<vmem>>, %arg4: memref<8x128xf32, #tpu.memory_space<vmem>>) attributes {dimension_semantics = [#tpu.dimension_semantics<parallel>], iteration_bounds = array<i64: 1>, scalar_prefetch = 1 : i64, scratch_operands = 0 : i64, tpu.core_type = #tpu.core_type<tc>, window_params = [{transform_indices = @transform_0, window_bounds = array<i64: 4, 8, 128>}, {transform_indices = @transform_1, window_bounds = array<i64: 4, 8, 128>}, {transform_indices = @transform_2, window_bounds = array<i64: 8, 128>}]} {
    %c0 = arith.constant 0 : index
    %c0_0 = arith.constant 0 : index
    %c0_1 = arith.constant 0 : index
    %0 = vector.load %arg2[%c0, %c0_0, %c0_1] : memref<4x8x128xf32, #tpu.memory_space<vmem>>, vector<1x8x128xf32>
    %1 = vector.shape_cast %0 : vector<1x8x128xf32> to vector<8x128xf32>
    %c1 = arith.constant 1 : index
    %c0_2 = arith.constant 0 : index
    %c0_3 = arith.constant 0 : index
    %2 = vector.load %arg2[%c1, %c0_2, %c0_3] : memref<4x8x128xf32, #tpu.memory_space<vmem>>, vector<1x8x128xf32>
    %3 = vector.shape_cast %2 : vector<1x8x128xf32> to vector<8x128xf32>
    %c2 = arith.constant 2 : index
    %c0_4 = arith.constant 0 : index
    %c0_5 = arith.constant 0 : index
    %4 = vector.load %arg2[%c2, %c0_4, %c0_5] : memref<4x8x128xf32, #tpu.memory_space<vmem>>, vector<1x8x128xf32>
    %5 = vector.shape_cast %4 : vector<1x8x128xf32> to vector<8x128xf32>
    %c3 = arith.constant 3 : index
    %c0_6 = arith.constant 0 : index
    %c0_7 = arith.constant 0 : index
    %6 = vector.load %arg2[%c3, %c0_6, %c0_7] : memref<4x8x128xf32, #tpu.memory_space<vmem>>, vector<1x8x128xf32>
    %7 = vector.shape_cast %6 : vector<1x8x128xf32> to vector<8x128xf32>
    %c0_8 = arith.constant 0 : index
    %c0_9 = arith.constant 0 : index
    %c0_10 = arith.constant 0 : index
    %8 = vector.load %arg3[%c0_8, %c0_9, %c0_10] : memref<4x8x128xf32, #tpu.memory_space<vmem>>, vector<1x8x128xf32>
    %9 = vector.shape_cast %8 : vector<1x8x128xf32> to vector<8x128xf32>
    %c1_11 = arith.constant 1 : index
    %c0_12 = arith.constant 0 : index
    %c0_13 = arith.constant 0 : index
    %10 = vector.load %arg3[%c1_11, %c0_12, %c0_13] : memref<4x8x128xf32, #tpu.memory_space<vmem>>, vector<1x8x128xf32>
    %11 = vector.shape_cast %10 : vector<1x8x128xf32> to vector<8x128xf32>
    %c2_14 = arith.constant 2 : index
    %c0_15 = arith.constant 0 : index
    %c0_16 = arith.constant 0 : index
    %12 = vector.load %arg3[%c2_14, %c0_15, %c0_16] : memref<4x8x128xf32, #tpu.memory_space<vmem>>, vector<1x8x128xf32>
    %13 = vector.shape_cast %12 : vector<1x8x128xf32> to vector<8x128xf32>
    %c3_17 = arith.constant 3 : index
    %c0_18 = arith.constant 0 : index
    %c0_19 = arith.constant 0 : index
    %14 = vector.load %arg3[%c3_17, %c0_18, %c0_19] : memref<4x8x128xf32, #tpu.memory_space<vmem>>, vector<1x8x128xf32>
    %15 = vector.shape_cast %14 : vector<1x8x128xf32> to vector<8x128xf32>
    %cst = arith.constant 5.000000e-01 : f32
    %16 = vector.broadcast %cst : f32 to vector<8x128xf32>
    %17 = arith.mulf %5, %16 : vector<8x128xf32>
    %18 = arith.subf %1, %17 : vector<8x128xf32>
    %cst_20 = arith.constant 5.000000e-01 : f32
    %19 = vector.broadcast %cst_20 : f32 to vector<8x128xf32>
    %20 = arith.mulf %5, %19 : vector<8x128xf32>
    %21 = arith.addf %1, %20 : vector<8x128xf32>
    %cst_21 = arith.constant 5.000000e-01 : f32
    %22 = vector.broadcast %cst_21 : f32 to vector<8x128xf32>
    %23 = arith.mulf %7, %22 : vector<8x128xf32>
    %24 = arith.subf %3, %23 : vector<8x128xf32>
    %cst_22 = arith.constant 5.000000e-01 : f32
    %25 = vector.broadcast %cst_22 : f32 to vector<8x128xf32>
    %26 = arith.mulf %7, %25 : vector<8x128xf32>
    %27 = arith.addf %3, %26 : vector<8x128xf32>
    %cst_23 = arith.constant 5.000000e-01 : f32
    %28 = vector.broadcast %cst_23 : f32 to vector<8x128xf32>
    %29 = arith.mulf %13, %28 : vector<8x128xf32>
    %30 = arith.subf %9, %29 : vector<8x128xf32>
    %cst_24 = arith.constant 5.000000e-01 : f32
    %31 = vector.broadcast %cst_24 : f32 to vector<8x128xf32>
    %32 = arith.mulf %13, %31 : vector<8x128xf32>
    %33 = arith.addf %9, %32 : vector<8x128xf32>
    %cst_25 = arith.constant 5.000000e-01 : f32
    %34 = vector.broadcast %cst_25 : f32 to vector<8x128xf32>
    %35 = arith.mulf %15, %34 : vector<8x128xf32>
    %36 = arith.subf %11, %35 : vector<8x128xf32>
    %cst_26 = arith.constant 5.000000e-01 : f32
    %37 = vector.broadcast %cst_26 : f32 to vector<8x128xf32>
    %38 = arith.mulf %15, %37 : vector<8x128xf32>
    %39 = arith.addf %11, %38 : vector<8x128xf32>
    %40 = arith.maximumf %18, %30 : vector<8x128xf32>
    %41 = arith.maximumf %24, %36 : vector<8x128xf32>
    %42 = arith.minimumf %21, %33 : vector<8x128xf32>
    %43 = arith.minimumf %27, %39 : vector<8x128xf32>
    %c0_27 = arith.constant 0 : index
    %44 = memref.load %arg1[%c0_27] : memref<1xi32, #tpu.memory_space<smem>>
    %45 = arith.sitofp %44 : i32 to f32
    %46 = arith.subf %42, %40 : vector<8x128xf32>
    %47 = arith.subf %43, %41 : vector<8x128xf32>
    %48 = arith.mulf %46, %47 : vector<8x128xf32>
    %49 = vector.broadcast %45 : f32 to vector<8x128xf32>
    %50 = arith.mulf %48, %49 : vector<8x128xf32>
    %51 = arith.mulf %5, %7 : vector<8x128xf32>
    %52 = arith.mulf %13, %15 : vector<8x128xf32>
    %53 = arith.addf %51, %52 : vector<8x128xf32>
    %54 = arith.subf %53, %50 : vector<8x128xf32>
    %cst_28 = arith.constant 1.000000e-07 : f32
    %55 = vector.broadcast %cst_28 : f32 to vector<8x128xf32>
    %56 = arith.maximumf %54, %55 : vector<8x128xf32>
    %57 = arith.divf %50, %56 : vector<8x128xf32>
    %58 = arith.mulf %57, %57 : vector<8x128xf32>
    %cst_29 = arith.constant 1.000000e+00 : f32
    %59 = vector.broadcast %cst_29 : f32 to vector<8x128xf32>
    %60 = arith.subf %59, %58 : vector<8x128xf32>
    %c0_30 = arith.constant 0 : index
    %c0_31 = arith.constant 0 : index
    %61 = vector.load %arg4[%c0_30, %c0_31] : memref<8x128xf32, #tpu.memory_space<vmem>>, vector<8x128xf32>
    tpu.vector_store %arg4[%c0_30, %c0_31], %60 {strides = array<i32>} : memref<8x128xf32, #tpu.memory_space<vmem>>, vector<8x128xf32>,
    return
  }
  func.func @transform_0(%arg0: i32, %arg1: memref<1xi32, #tpu.memory_space<smem>>) -> (i32, i32, i32) {
    %c0_i32 = arith.constant 0 : i32
    %c0_i32_0 = arith.constant 0 : i32
    %c0_i32_1 = arith.constant 0 : i32
    return %c0_i32, %arg0, %c0_i32_0 : i32, i32, i32
  }
  func.func @transform_1(%arg0: i32, %arg1: memref<1xi32, #tpu.memory_space<smem>>) -> (i32, i32, i32) {
    %c0_i32 = arith.constant 0 : i32
    %c0_i32_0 = arith.constant 0 : i32
    %c0_i32_1 = arith.constant 0 : i32
    return %c0_i32, %arg0, %c0_i32_0 : i32, i32, i32
  }
  func.func @transform_2(%arg0: i32, %arg1: memref<1xi32, #tpu.memory_space<smem>>) -> (i32, i32) {
    %c0_i32 = arith.constant 0 : i32
    %c0_i32_0 = arith.constant 0 : i32
    return %arg0, %c0_i32 : i32, i32
  }
}

</mosaic_0001>

<llo_original>
// kernel: iou_loss.1
$region0: #{iou_loss.1}
  #allocation0 [shape = 'u32[]', space=smem, size = 0x4, offset = 0x4, fixed_abs, tag = 'smem constant byte address 0x4 - core index']
  #allocation1 [shape = 'u32[144,128]{1,0:T(1,128)}', space=vmem, size = 0x12000, scoped, tag = 'internal scratch']
  #allocation2 [shape = 's32[1]{0}', space=sflag, size = 0x4, scoped, tag = 'scoped memory for iou_loss.1']
  #allocation3 [shape = 's32[1]{0:T(128)S(6)}', space=smem, size = 0x200, scoped, tag = 'prefetched SMEM operand 0']
  %s0 = inlined_call_operand.<no memory space> [shape: s32[1], index: 0, kind: input, shape index: {}]
  %s1 = inlined_call_operand.vmem [shape: f32[4,8,128], index: 1, kind: input, shape index: {}]
  %s2 = inlined_call_operand.vmem [shape: f32[4,8,128], index: 2, kind: input, shape index: {}]
  %s3 = inlined_call_operand.vmem [shape: f32[8,128], index: 3, kind: output, shape index: {}]
  %s4 = sld [smem:[#allocation0]]
  $region18: #{iou_loss.1} parent=0
    _
  %s6 = ssub.s32 1, %s4
  %s7 = scalar_select 0, %s6, %s4
  %8 = sst [smem:[#allocation3]] %s0
  // Predicated region
  $region2: #{iou_loss.1} parent=0 // pred_check
    _
  $region3: #{iou_loss.1} parent=0 // pred_check_branch
    %10 = sbr.rel (0) target = $region5
  $region4: #{iou_loss.1} parent=0 // pred_region
    _
  $region5: #{iou_loss.1} parent=0 // pred_fallthru
    _
  // Predicated region
  $region6: #{iou_loss.1} parent=0 // pred_check
    _
  $region7: #{iou_loss.1} parent=0 // pred_check_branch
    %12 = sbr.rel (0) target = $region9
  $region8: #{iou_loss.1} parent=0 // pred_region
    _
  $region9: #{iou_loss.1} parent=0 // pred_fallthru
    _
  %v13 = vld [vmem:[%s1] sm:$0xff]
  %s14 = scalar_lea.vmem %s1, 8
  %v15 = vld [vmem:[%s14] sm:$0xff]
  %s16 = scalar_lea.vmem %s1, 16
  %v17 = vld [vmem:[%s16] sm:$0xff]
  %s18 = scalar_lea.vmem %s1, 24
  %v19 = vld [vmem:[%s18] sm:$0xff]
  %v20 = vld [vmem:[%s2] sm:$0xff]
  %s21 = scalar_lea.vmem %s2, 8
  %v22 = vld [vmem:[%s21] sm:$0xff]
  %s23 = scalar_lea.vmem %s2, 16
  %v24 = vld [vmem:[%s23] sm:$0xff]
  %s25 = scalar_lea.vmem %s2, 24
  %v26 = vld [vmem:[%s25] sm:$0xff]
  %v27 = vmul.f32 %v17, 0.5
  %v28 = vsub.f32 %v13, %v27
  %v29 = vadd.f32 %v13, %v27
  %v30 = vmul.f32 %v19, 0.5
  %v31 = vsub.f32 %v15, %v30
  %v32 = vadd.f32 %v15, %v30
  %v33 = vmul.f32 %v24, 0.5
  %v34 = vsub.f32 %v20, %v33
  %v35 = vadd.f32 %v20, %v33
  %v36 = vmul.f32 %v26, 0.5
  %v37 = vsub.f32 %v22, %v36
  %v38 = vadd.f32 %v22, %v36
  %v39 = vmax.f32 %v28, %v34
  %v40 = vmax.f32 %v31, %v37
  %v41 = vmin.f32 %v29, %v35
  %v42 = vmin.f32 %v32, %v38
  %s43 = sld [smem:[#allocation3]]
  %s44 = scvt.s32.f32 %s43
  %v45 = vsub.f32 %v41, %v39
  %v46 = vsub.f32 %v42, %v40
  %v47 = vmul.f32 %v45, %v46
  %v48 = vstv %s44
  %v49 = vmul.f32 %v47, %v48
  %v50 = vmul.f32 %v17, %v19
  %v51 = vmul.f32 %v24, %v26
  %v52 = vadd.f32 %v50, %v51
  %v53 = vsub.f32 %v52, %v49
  %v54 = vmax.f32 %v53, 1e-07
  %v55 = vrcp.pop %v54
  %v56 = vmul.f32 %v49, %v55
  %v57 = vmul.f32 %v56, %v56
  %v58 = vsub.f32 1.0, %v57
  %59 = vst [vmem:[%s3] sm:$0xff] %v58
  // Predicated region
  $region10: #{iou_loss.1} parent=0 // pred_check
    _
  $region11: #{iou_loss.1} parent=0 // pred_check_branch
    %61 = sbr.rel (0) target = $region13
  $region12: #{iou_loss.1} parent=0 // pred_region
    _
  $region13: #{iou_loss.1} parent=0 // pred_fallthru
    _
  // Predicated region
  $region14: #{iou_loss.1} parent=0 // pred_check
    _
  $region15: #{iou_loss.1} parent=0 // pred_check_branch
    %63 = sbr.rel (0) target = $region17
  $region16: #{iou_loss.1} parent=0 // pred_region
    _
  $region17: #{iou_loss.1} parent=0 // pred_fallthru
    _

</llo_original>
